<compile_context>
chip_gen: v7x
topology: tpu7x:2x2x1
jax: 0.10.0
libtpu: 0.0.40
codegen_flags: <defaults>
</compile_context>

<pallas_src>
import jax
import jax.numpy as jnp
from jax.experimental import pallas as pl
from jax.experimental.pallas import tpu as pltpu


_VMEM_LIMIT_BYTES = 40 * 1024 * 1024   # explicit scoped-VMEM limit (OK on v5e/v6e/v7x)
_FUSED_SLAB_BYTES = 4 * 1024 * 1024    # fuse when C*HW*itemsize <= this (≈6x slab peak VMEM)
_P1_TILE_BUDGET   = 12 * 1024 * 1024   # pass 1 streams only its input block (2x buffered)
_P2_TILE_BUDGET   = 16 * 1024 * 1024   # pass 2 streams input + output blocks (4x buffered)


def _pick_hw_tile(hw, c, itemsize, streamed_blocks, budget_bytes):
    """Largest lane-dense HW tile within `budget_bytes` for `streamed_blocks`
    double-buffered (1, C, tile) blocks.  Does NOT need to divide HW: callers
    use pl.cdiv grids and mask/clip the ragged tail."""
    bytes_per_lane = max(1, streamed_blocks * c * itemsize)
    max_lanes = budget_bytes // bytes_per_lane
    if hw <= max_lanes:
        return hw                      # full HW: always a legal (full-dim) block
    t = (max_lanes // 512) * 512       # prefer multiples of 512 (lane-dense, fewer steps)
    if t == 0:
        t = max(128, (max_lanes // 128) * 128)
    return t


def _gab_fused(x, w1, b1, w2, b2):
    """Single-pass: pool + MLP + gate + multiply, grid=(N,)."""
    N, C, HW = x.shape
    Cr = w1.shape[0]
    inv_hw = float(1.0 / HW)

    def fused_kernel(x_ref, w1_ref, b1_ref, w2_ref, b2_ref, o_ref):
        xs = x_ref[0]                                                    # (C, HW)
        pooled = jnp.sum(xs.astype(jnp.float32), axis=-1,
                         keepdims=True) * inv_hw                         # (C, 1) f32
        # conv1 (1x1, C -> Cr) + ReLU  ==  W1 @ pooled + b1 (column form)
        z1 = jnp.dot(w1_ref[...].astype(jnp.float32), pooled,
                     preferred_element_type=jnp.float32)
        z1 = jnp.maximum(z1 + b1_ref[...].astype(jnp.float32), 0.0)      # (Cr, 1)
        # conv2 (1x1, Cr -> C) + sigmoid
        z2 = jnp.dot(w2_ref[...].astype(jnp.float32), z1,
                     preferred_element_type=jnp.float32)
        z2 = jax.nn.sigmoid(z2 + b2_ref[...].astype(jnp.float32))        # (C, 1)
        o_ref[0] = xs * z2.astype(xs.dtype)                              # lane broadcast

    return pl.pallas_call(
        fused_kernel,
        out_shape=jax.ShapeDtypeStruct((N, C, HW), x.dtype),
        grid_spec=pltpu.PrefetchScalarGridSpec(
            num_scalar_prefetch=0,
            grid=(N,),
            in_specs=[
                pl.BlockSpec((1, C, HW), lambda n: (n, 0, 0)),   # full per-batch slab
                pl.BlockSpec((Cr, C), lambda n: (0, 0)),         # w1
                pl.BlockSpec((Cr, 1), lambda n: (0, 0)),         # b1
                pl.BlockSpec((C, Cr), lambda n: (0, 0)),         # w2
                pl.BlockSpec((C, 1), lambda n: (0, 0)),          # b2
            ],
            out_specs=pl.BlockSpec((1, C, HW), lambda n: (n, 0, 0)),
        ),
        compiler_params=pltpu.CompilerParams(
            dimension_semantics=("parallel",),
            vmem_limit_bytes=_VMEM_LIMIT_BYTES),
    )(x, w1, b1, w2, b2)


def _gab_two_pass(x, w1, b1, w2, b2, hw_tile_p1, hw_tile_p2):
    """Fallback for large slabs: tiled pooling+MLP pass, then a gating pass."""
    N, C, HW = x.shape
    Cr = w1.shape[0]
    inv_hw = float(1.0 / HW)

    # ---------------- Pass 1: global average pool + squeeze MLP ----------------
    n_hw1 = pl.cdiv(HW, hw_tile_p1)
    ragged1 = (HW % hw_tile_p1) != 0

    def pool_mlp_kernel(x_ref, w1_ref, b1_ref, w2_ref, b2_ref, z_ref, acc_ref):
        t = pl.program_id(1)

        @pl.when(t == 0)
        def _init():
            acc_ref[...] = jnp.zeros_like(acc_ref)

        xs = x_ref[0].astype(jnp.float32)                       # (C, hw_tile)
        if ragged1:
            # Mask out-of-bounds lanes of the last (ragged) tile.
            lane = jax.lax.broadcasted_iota(jnp.int32, (C, hw_tile_p1), 1)
            xs = jnp.where(t * hw_tile_p1 + lane < HW, xs, 0.0)
        # VPU/XLU lane reduction (better than a 1-column MXU matmul on v5e).
        acc_ref[...] += jnp.sum(xs, axis=-1, keepdims=True)[None]

        @pl.when(t == pl.num_programs(1) - 1)
        def _finalize():
            pooled = acc_ref[0] * inv_hw                        # (C, 1) f32
            z1 = jnp.dot(w1_ref[...].astype(jnp.float32), pooled,
                         preferred_element_type=jnp.float32)
            z1 = jnp.maximum(z1 + b1_ref[...].astype(jnp.float32), 0.0)
            z2 = jnp.dot(w2_ref[...].astype(jnp.float32), z1,
                         preferred_element_type=jnp.float32)
            z2 = jax.nn.sigmoid(z2 + b2_ref[...].astype(jnp.float32))
            # Emit the gate already in x.dtype so pass 2 has no per-tile cast.
            z_ref[...] = z2.astype(z_ref.dtype)[None]

    z_gate = pl.pallas_call(
        pool_mlp_kernel,
        out_shape=jax.ShapeDtypeStruct((N, C, 1), x.dtype),
        grid_spec=pltpu.PrefetchScalarGridSpec(
            num_scalar_prefetch=0,
            grid=(N, n_hw1),
            in_specs=[
                pl.BlockSpec((1, C, hw_tile_p1), lambda n, t: (n, 0, t)),  # x tile
                pl.BlockSpec((Cr, C), lambda n, t: (0, 0)),                # w1
                pl.BlockSpec((Cr, 1), lambda n, t: (0, 0)),                # b1
                pl.BlockSpec((C, Cr), lambda n, t: (0, 0)),                # w2
                pl.BlockSpec((C, 1), lambda n, t: (0, 0)),                 # b2
            ],
            out_specs=pl.BlockSpec((1, C, 1), lambda n, t: (n, 0, 0)),
            scratch_shapes=[pltpu.VMEM((1, C, 1), jnp.float32)],
        ),
        compiler_params=pltpu.CompilerParams(
            dimension_semantics=("parallel", "arbitrary"),
            vmem_limit_bytes=_VMEM_LIMIT_BYTES),
    )(x, w1, b1, w2, b2)

    # ---------------- Pass 2: channel-wise gating (x * z2) ----------------
    n_hw2 = pl.cdiv(HW, hw_tile_p2)

    def gate_kernel(x_ref, z_ref, o_ref):
        # Gate is already in x.dtype; ragged-tail stores are clipped by Pallas.
        o_ref[...] = x_ref[...] * z_ref[...]

    out = pl.pallas_call(
        gate_kernel,
        out_shape=jax.ShapeDtypeStruct((N, C, HW), x.dtype),
        grid_spec=pltpu.PrefetchScalarGridSpec(
            num_scalar_prefetch=0,
            grid=(N, n_hw2),
            in_specs=[
                pl.BlockSpec((1, C, hw_tile_p2), lambda n, t: (n, 0, t)),  # x tile
                pl.BlockSpec((1, C, 1), lambda n, t: (n, 0, 0)),           # gate
            ],
            out_specs=pl.BlockSpec((1, C, hw_tile_p2), lambda n, t: (n, 0, t)),
        ),
        compiler_params=pltpu.CompilerParams(
            dimension_semantics=("parallel", "parallel"),
            vmem_limit_bytes=_VMEM_LIMIT_BYTES),
    )(x, z_gate)

    return out


def gab_forward(x_nchw, w1, b1, w2, b2, *,
                max_fused_bytes=_FUSED_SLAB_BYTES, hw_tile_override=None):
    """SE-style gating block, NCHW in / NCHW out.

    x_nchw: (N, C, H, W)
    w1: (Cr, C)  -- conv1.weight[:, :, 0, 0]
    b1: (Cr, 1)  -- conv1.bias[:, None]
    w2: (C, Cr)  -- conv2.weight[:, :, 0, 0]
    b2: (C, 1)   -- conv2.bias[:, None]
    """
    N, C, H, W = x_nchw.shape
    HW = H * W

    # Free reshape (contiguous dims merged) -- no transpose, no extra HBM pass.
    x = x_nchw.reshape(N, C, HW)
    itemsize = x.dtype.itemsize
    slab_bytes = C * HW * itemsize

    if slab_bytes <= max_fused_bytes:
        out = _gab_fused(x, w1, b1, w2, b2)
    else:
        if hw_tile_override is not None:
            hw_tile_p1 = hw_tile_p2 = min(int(hw_tile_override), HW)
        else:
            hw_tile_p1 = _pick_hw_tile(HW, C, itemsize, 2, _P1_TILE_BUDGET)
            hw_tile_p2 = _pick_hw_tile(HW, C, itemsize, 4, _P2_TILE_BUDGET)
        # TODO(synk): for very small C with huge HW, pack batch rows into
        # sublanes ((N*C, HW) blocks) in pass 2 to fill the 8/16-row groups.
        out = _gab_two_pass(x, w1, b1, w2, b2, hw_tile_p1, hw_tile_p2)

    return out.reshape(N, C, H, W)   # free reshape back to NCHW


def gab_reference(x_nchw, w1, b1, w2, b2):
    """Pure-JAX reference matching the PyTorch forward (NCHW)."""
    xf = x_nchw.astype(jnp.float32)
    pooled = jnp.mean(xf, axis=(2, 3))                            # (N, C)
    z1 = jnp.maximum(pooled @ w1.T + b1[:, 0], 0.0)               # (N, Cr)
    z2 = jax.nn.sigmoid(z1 @ w2.T + b2[:, 0])                     # (N, C)
    return (xf * z2[:, :, None, None]).astype(x_nchw.dtype)


if __name__ == "__main__":
    # Small shapes consistent with the module: batch=2, channels=8,
    # spatial=16x16, reduction=4 -> hidden channels = 2.
    N, C, H, W = 2, 8, 16, 16
    reduction = 4
    Cr = C // reduction

    key = jax.random.PRNGKey(0)
    kx, kw1, kb1, kw2, kb2 = jax.random.split(key, 5)

    x = jax.random.normal(kx, (N, C, H, W), dtype=jnp.float32)

    # Parameters in PyTorch-native conv layout (1x1 kernels squeezed):
    w1 = jax.random.normal(kw1, (Cr, C), dtype=jnp.float32) * 0.1
    b1 = jax.random.normal(kb1, (Cr, 1), dtype=jnp.float32) * 0.1
    w2 = jax.random.normal(kw2, (C, Cr), dtype=jnp.float32) * 0.1
    b2 = jax.random.normal(kb2, (C, 1), dtype=jnp.float32) * 0.1

    # --- Fused single-pass path (default for this size) ---
    out = jax.block_until_ready(gab_forward(x, w1, b1, w2, b2))
    ref = gab_reference(x, w1, b1, w2, b2)
    assert out.shape == (N, C, H, W)
    assert jnp.allclose(out, ref, atol=1e-5, rtol=1e-5), "fused path mismatch"

    # --- Two-pass fallback with a ragged (non-128-multiple) spatial size ---
    H2, W2 = 13, 13   # HW = 169: exercises the cdiv grid + lane masking path
    x2 = jax.random.normal(kx, (N, C, H2, W2), dtype=jnp.float32)
    out2 = jax.block_until_ready(
        gab_forward(x2, w1, b1, w2, b2, max_fused_bytes=0, hw_tile_override=128))
    ref2 = gab_reference(x2, w1, b1, w2, b2)
    assert out2.shape == (N, C, H2, W2)
    assert jnp.allclose(out2, ref2, atol=1e-5, rtol=1e-5), "two-pass path mismatch"

    print("KERNEL_OK")
</pallas_src>

<mosaic_0001>
module attributes {stable_mosaic.version = 11 : i64} {
  func.func @fused_kernel(%arg0: i32, %arg1: memref<1x8x256xf32, #tpu.memory_space<vmem>>, %arg2: memref<2x8xf32, #tpu.memory_space<vmem>>, %arg3: memref<2x1xf32, #tpu.memory_space<vmem>>, %arg4: memref<8x2xf32, #tpu.memory_space<vmem>>, %arg5: memref<8x1xf32, #tpu.memory_space<vmem>>, %arg6: memref<1x8x256xf32, #tpu.memory_space<vmem>>) attributes {dimension_semantics = [#tpu.dimension_semantics<parallel>], iteration_bounds = array<i64: 2>, scalar_prefetch = 0 : i64, scratch_operands = 0 : i64, tpu.core_type = #tpu.core_type<tc>, window_params = [{transform_indices = @transform_0, window_bounds = array<i64: 1, 8, 256>}, {pipeline_mode = #tpu.pipeline_mode<synchronous>, transform_indices = @transform_1, window_bounds = array<i64: 2, 8>}, {pipeline_mode = #tpu.pipeline_mode<synchronous>, transform_indices = @transform_2, window_bounds = array<i64: 2, 1>}, {pipeline_mode = #tpu.pipeline_mode<synchronous>, transform_indices = @transform_3, window_bounds = array<i64: 8, 2>}, {pipeline_mode = #tpu.pipeline_mode<synchronous>, transform_indices = @transform_4, window_bounds = array<i64: 8, 1>}, {transform_indices = @transform_5, window_bounds = array<i64: 1, 8, 256>}]} {
    %c0 = arith.constant 0 : index
    %c0_0 = arith.constant 0 : index
    %c0_1 = arith.constant 0 : index
    %0 = vector.load %arg1[%c0, %c0_0, %c0_1] : memref<1x8x256xf32, #tpu.memory_space<vmem>>, vector<1x8x256xf32>
    %1 = vector.shape_cast %0 : vector<1x8x256xf32> to vector<8x256xf32>
    %cst = arith.constant dense<0.000000e+00> : vector<8xf32>
    %2 = vector.multi_reduction <add>, %1, %cst [1] : vector<8x256xf32> to vector<8xf32>
    %3 = vector.shape_cast %2 : vector<8xf32> to vector<8x1xf32>
    %cst_2 = arith.constant 3.906250e-03 : f32
    %4 = vector.broadcast %cst_2 : f32 to vector<8x1xf32>
    %5 = arith.mulf %3, %4 : vector<8x1xf32>
    %c0_3 = arith.constant 0 : index
    %c0_4 = arith.constant 0 : index
    %6 = vector.load %arg2[%c0_3, %c0_4] : memref<2x8xf32, #tpu.memory_space<vmem>>, vector<2x8xf32>
    %cst_5 = arith.constant dense<0.000000e+00> : vector<2x1xf32>
    %7 = tpu.matmul %6, %5, %cst_5 {dimension_numbers = #tpu.dot_dimension_numbers<[1], [0], [0], [1], [0, 0, 1, 1], [], []>} : vector<2x8xf32>, vector<8x1xf32>, vector<2x1xf32> -> vector<2x1xf32>
    %c0_6 = arith.constant 0 : index
    %c0_7 = arith.constant 0 : index
    %8 = vector.load %arg3[%c0_6, %c0_7] : memref<2x1xf32, #tpu.memory_space<vmem>>, vector<2x1xf32>
    %9 = arith.addf %7, %8 : vector<2x1xf32>
    %cst_8 = arith.constant 0.000000e+00 : f32
    %10 = vector.broadcast %cst_8 : f32 to vector<2x1xf32>
    %11 = arith.maximumf %9, %10 : vector<2x1xf32>
    %c0_9 = arith.constant 0 : index
    %c0_10 = arith.constant 0 : index
    %12 = vector.load %arg4[%c0_9, %c0_10] : memref<8x2xf32, #tpu.memory_space<vmem>>, vector<8x2xf32>
    %cst_11 = arith.constant dense<0.000000e+00> : vector<8x1xf32>
    %13 = tpu.matmul %12, %11, %cst_11 {dimension_numbers = #tpu.dot_dimension_numbers<[1], [0], [0], [1], [0, 0, 1, 1], [], []>} : vector<8x2xf32>, vector<2x1xf32>, vector<8x1xf32> -> vector<8x1xf32>
    %c0_12 = arith.constant 0 : index
    %c0_13 = arith.constant 0 : index
    %14 = vector.load %arg5[%c0_12, %c0_13] : memref<8x1xf32, #tpu.memory_space<vmem>>, vector<8x1xf32>
    %15 = arith.addf %13, %14 : vector<8x1xf32>
    %16 = arith.negf %15 : vector<8x1xf32>
    %17 = math.exp %16 : vector<8x1xf32>
    %cst_14 = arith.constant 1.000000e+00 : f32
    %18 = vector.broadcast %cst_14 : f32 to vector<8x1xf32>
    %19 = arith.addf %18, %17 : vector<8x1xf32>
    %20 = arith.divf %18, %19 : vector<8x1xf32>
    %21 = vector.broadcast %20 : vector<8x1xf32> to vector<8x256xf32>
    %22 = arith.mulf %1, %21 : vector<8x256xf32>
    %c0_15 = arith.constant 0 : index
    %c0_16 = arith.constant 0 : index
    %c0_17 = arith.constant 0 : index
    %23 = vector.load %arg6[%c0_15, %c0_16, %c0_17] : memref<1x8x256xf32, #tpu.memory_space<vmem>>, vector<1x8x256xf32>
    %24 = vector.shape_cast %23 : vector<1x8x256xf32> to vector<8x256xf32>
    %25 = vector.shape_cast %22 : vector<8x256xf32> to vector<1x8x256xf32>
    tpu.vector_store %arg6[%c0_15, %c0_16, %c0_17], %25 {strides = array<i32>} : memref<1x8x256xf32, #tpu.memory_space<vmem>>, vector<1x8x256xf32>,
    return
  }
  func.func @transform_0(%arg0: i32) -> (i32, i32, i32) {
    %c0_i32 = arith.constant 0 : i32
    %c0_i32_0 = arith.constant 0 : i32
    %c0_i32_1 = arith.constant 0 : i32
    return %arg0, %c0_i32, %c0_i32_0 : i32, i32, i32
  }
  func.func @transform_1(%arg0: i32) -> (i32, i32) {
    %c0_i32 = arith.constant 0 : i32
    %c0_i32_0 = arith.constant 0 : i32
    %c0_i32_1 = arith.constant 0 : i32
    return %c0_i32, %c0_i32_0 : i32, i32
  }
  func.func @transform_2(%arg0: i32) -> (i32, i32) {
    %c0_i32 = arith.constant 0 : i32
    %c0_i32_0 = arith.constant 0 : i32
    %c0_i32_1 = arith.constant 0 : i32
    return %c0_i32, %c0_i32_0 : i32, i32
  }
  func.func @transform_3(%arg0: i32) -> (i32, i32) {
    %c0_i32 = arith.constant 0 : i32
    %c0_i32_0 = arith.constant 0 : i32
    %c0_i32_1 = arith.constant 0 : i32
    return %c0_i32, %c0_i32_0 : i32, i32
  }
  func.func @transform_4(%arg0: i32) -> (i32, i32) {
    %c0_i32 = arith.constant 0 : i32
    %c0_i32_0 = arith.constant 0 : i32
    %c0_i32_1 = arith.constant 0 : i32
    return %c0_i32, %c0_i32_0 : i32, i32
  }
  func.func @transform_5(%arg0: i32) -> (i32, i32, i32) {
    %c0_i32 = arith.constant 0 : i32
    %c0_i32_0 = arith.constant 0 : i32
    %c0_i32_1 = arith.constant 0 : i32
    return %arg0, %c0_i32, %c0_i32_0 : i32, i32, i32
  }
}

</mosaic_0001>

<llo_original>
// kernel: tpu_custom_call.1
$region0: #{tpu_custom_call.1}
  #allocation0 [shape = 'u32[]', space=smem, size = 0x4, offset = 0x4, fixed_abs, tag = 'smem constant byte address 0x4 - core index']
  #allocation1 [shape = 'u32[144,128]{1,0:T(1,128)}', space=vmem, size = 0x12000, scoped, tag = 'internal scratch']
  %s0 = inlined_call_operand.hbm [shape: f32[2,8,256], index: 0, kind: input, shape index: {}]
  %s1 = inlined_call_operand.vmem [shape: f32[2,8], index: 1, kind: input, shape index: {}]
  %s2 = inlined_call_operand.vmem [shape: f32[2,1], index: 2, kind: input, shape index: {}]
  %s3 = inlined_call_operand.vmem [shape: f32[8,2], index: 3, kind: input, shape index: {}]
  %s4 = inlined_call_operand.vmem [shape: f32[8,1], index: 4, kind: input, shape index: {}]
  %s5 = inlined_call_operand.hbm [shape: f32[2,8,256], index: 5, kind: output, shape index: {}]
  %s6 = sld [smem:[#allocation0]]
  $region57: #{tpu_custom_call.1} parent=0
    _
  %s8 = ssub.s32 1, %s6
  %s9 = scalar_select 0, %s8, %s6
  $region1: #{tpu_custom_call.1} parent=0
    #allocation2 [shape = 'u8[16384]{0}', space=vmem, size = 0x4000, scoped, tag = 'input window, operand 0']
    #allocation3 [shape = 's32[2]{0}', space=sflag, size = 0x8, scoped, tag = 'scoped memory for tpu_custom_call.1']
    #allocation4 [shape = 's32[2]{0}', space=sflag, size = 0x8, scoped, tag = 'scoped memory for tpu_custom_call.1']
    #allocation5 [shape = 'u8[16384]{0}', space=vmem, size = 0x4000, scoped, tag = 'output window, operand 0']
    %10 = vsyncpa [#allocation3], 0
    %s11 = scalar_lea.sflag [#allocation3], 1
    %12 = vsyncpa %s11, 0
    %13 = vsyncpa [#allocation4], 0
    %s14 = scalar_lea.sflag [#allocation4], 1
    %15 = vsyncpa %s14, 0
    loop: start=0, step=1, limit=4
    $region2: #{tpu_custom_call.1} parent=1 // loop_pre_header
      _
    $region3: #{tpu_custom_call.1} parent=1 // loop_header
      %s17 = sphi 0, %s21
      %p18 = scmp.ge.s32.totalorder %s17, 4
      %s27 = sphi 0, %s29
      %s30 = sphi 0, %s27
      %s31 = sphi 0, %s30
      %s47 = sphi 0, %s31
      %s51 = sphi 0, %s51
      %s53 = sphi 0, %s51
      %s54 = sphi 0, %s53
      %s68 = sphi 0, %s54
      %s72 = sphi 0, %s72
      %s74 = sphi 0, %s72
      %s75 = sphi 0, %s74
      %s89 = sphi 0, %s75
      %s93 = sphi 0, %s93
      %s95 = sphi 0, %s93
      %s96 = sphi 0, %s95
      %s110 = sphi 0, %s96
      %s114 = sphi 0, %s114
      %s116 = sphi 0, %s114
      %s117 = sphi 0, %s116
      %s131 = sphi 0, %s117
      %s137 = sphi 0, %s139
      %s140 = sphi 0, %s137
      %s141 = sphi 0, %s140
      %s157 = sphi 0, %s141
    $region4: #{tpu_custom_call.1} parent=1 // loop_header_branch
      %20 = sbr.rel (%p18) target = $region8
    $region5: #{tpu_custom_call.1} parent=1 // loop_body
      %s22 = ssub.s32 %s17, 1
      %s23 = ssub.s32 %s17, 2
      %s24 = sadd.s32 %s17, 1
      %s25 = ssub.s32 %s17, %s24
      %p26 = scmp.eq.s32.totalorder %s25, 0
      %s28 = sadd.s32 %s27, 1
      %s29 = scalar_select %p26, %s27, %s28
      %p32 = pneg %p26
      %p33 = scmp.eq.s32.totalorder %s17, 1
      %p34 = por %p32, %p33
      %p35 = scmp.ne.s32.totalorder %s27, %s30
      %p36 = scmp.eq.s32.totalorder %s17, 0
      %p37 = por %p35, %p36
      %p38 = scmp.ne.s32.totalorder %s27, %s30
      %p39 = scmp.eq.s32.totalorder %s22, 1
      %p40 = por %p38, %p39
      %p41 = scmp.ne.s32.totalorder %s30, %s31
      %p42 = scmp.eq.s32.totalorder %s22, 0
      %p43 = por %p41, %p42
      %p44 = scmp.ne.s32.totalorder %s30, %s31
      %p45 = scmp.eq.s32.totalorder %s23, 1
      %p46 = por %p44, %p45
      %p48 = scmp.ne.s32.totalorder %s31, %s47
      %p49 = scmp.eq.s32.totalorder %s23, 0
      %p50 = por %p48, %p49
      %s52 = sadd.s32 %s51, 1
      %p55 = scmp.eq.s32.totalorder %s17, 1
      %p56 = scmp.ne.s32.totalorder %s51, %s53
      %p57 = scmp.eq.s32.totalorder %s17, 0
      %p58 = por %p56, %p57
      %p59 = scmp.ne.s32.totalorder %s51, %s53
      %p60 = scmp.eq.s32.totalorder %s22, 1
      %p61 = por %p59, %p60
      %p62 = scmp.ne.s32.totalorder %s53, %s54
      %p63 = scmp.eq.s32.totalorder %s22, 0
      %p64 = por %p62, %p63
      %p65 = scmp.ne.s32.totalorder %s53, %s54
      %p66 = scmp.eq.s32.totalorder %s23, 1
      %p67 = por %p65, %p66
      %p69 = scmp.ne.s32.totalorder %s54, %s68
      %p70 = scmp.eq.s32.totalorder %s23, 0
      %p71 = por %p69, %p70
      %s73 = sadd.s32 %s72, 1
      %p76 = scmp.eq.s32.totalorder %s17, 1
      %p77 = scmp.ne.s32.totalorder %s72, %s74
      %p78 = scmp.eq.s32.totalorder %s17, 0
      %p79 = por %p77, %p78
      %p80 = scmp.ne.s32.totalorder %s72, %s74
      %p81 = scmp.eq.s32.totalorder %s22, 1
      %p82 = por %p80, %p81
      %p83 = scmp.ne.s32.totalorder %s74, %s75
      %p84 = scmp.eq.s32.totalorder %s22, 0
      %p85 = por %p83, %p84
      %p86 = scmp.ne.s32.totalorder %s74, %s75
      %p87 = scmp.eq.s32.totalorder %s23, 1
      %p88 = por %p86, %p87
      %p90 = scmp.ne.s32.totalorder %s75, %s89
      %p91 = scmp.eq.s32.totalorder %s23, 0
      %p92 = por %p90, %p91
      %s94 = sadd.s32 %s93, 1
      %p97 = scmp.eq.s32.totalorder %s17, 1
      %p98 = scmp.ne.s32.totalorder %s93, %s95
      %p99 = scmp.eq.s32.totalorder %s17, 0
      %p100 = por %p98, %p99
      %p101 = scmp.ne.s32.totalorder %s93, %s95
      %p102 = scmp.eq.s32.totalorder %s22, 1
      %p103 = por %p101, %p102
      %p104 = scmp.ne.s32.totalorder %s95, %s96
      %p105 = scmp.eq.s32.totalorder %s22, 0
      %p106 = por %p104, %p105
      %p107 = scmp.ne.s32.totalorder %s95, %s96
      %p108 = scmp.eq.s32.totalorder %s23, 1
      %p109 = por %p107, %p108
      %p111 = scmp.ne.s32.totalorder %s96, %s110
      %p112 = scmp.eq.s32.totalorder %s23, 0
      %p113 = por %p111, %p112
      %s115 = sadd.s32 %s114, 1
      %p118 = scmp.eq.s32.totalorder %s17, 1
      %p119 = scmp.ne.s32.totalorder %s114, %s116
      %p120 = scmp.eq.s32.totalorder %s17, 0
      %p121 = por %p119, %p120
      %p122 = scmp.ne.s32.totalorder %s114, %s116
      %p123 = scmp.eq.s32.totalorder %s22, 1
      %p124 = por %p122, %p123
      %p125 = scmp.ne.s32.totalorder %s116, %s117
      %p126 = scmp.eq.s32.totalorder %s22, 0
      %p127 = por %p125, %p126
      %p128 = scmp.ne.s32.totalorder %s116, %s117
      %p129 = scmp.eq.s32.totalorder %s23, 1
      %p130 = por %p128, %p129
      %p132 = scmp.ne.s32.totalorder %s117, %s131
      %p133 = scmp.eq.s32.totalorder %s23, 0
      %p134 = por %p132, %p133
      %s135 = ssub.s32 %s17, %s24
      %p136 = scmp.eq.s32.totalorder %s135, 0
      %s138 = sadd.s32 %s137, 1
      %s139 = scalar_select %p136, %s137, %s138
      %p142 = pneg %p136
      %p143 = scmp.eq.s32.totalorder %s17, 1
      %p144 = por %p142, %p143
      %p145 = scmp.ne.s32.totalorder %s137, %s140
      %p146 = scmp.eq.s32.totalorder %s17, 0
      %p147 = por %p145, %p146
      %p148 = scmp.ne.s32.totalorder %s137, %s140
      %p149 = scmp.eq.s32.totalorder %s22, 1
      %p150 = por %p148, %p149
      %p151 = scmp.ne.s32.totalorder %s140, %s141
      %p152 = scmp.eq.s32.totalorder %s22, 0
      %p153 = por %p151, %p152
      %p154 = scmp.ne.s32.totalorder %s140, %s141
      %p155 = scmp.eq.s32.totalorder %s23, 1
      %p156 = por %p154, %p155
      %p158 = scmp.ne.s32.totalorder %s141, %s157
      %p159 = scmp.eq.s32.totalorder %s23, 0
      %p160 = por %p158, %p159
      %p161 = scmp.le.s32.totalorder 1, %s17
      %p162 = scmp.lt.s32.totalorder %s17, 3
      %p163 = pnand %p161, %p162
      %p164 = pneg %p163
      // Predicated region
      $region9: #{tpu_custom_call.1} parent=5 // pred_check
        _
      $region10: #{tpu_custom_call.1} parent=5 // pred_check_branch
        %166 = sbr.rel (%p163) target = $region12
      $region11: #{tpu_custom_call.1} parent=5 // pred_region
        %s167 = ssub.s32 %s17, 1
        // Predicated region
        $region13: #{tpu_custom_call.1} parent=11 // pred_check
          %p168 = pneg %p64
        $region14: #{tpu_custom_call.1} parent=11 // pred_check_branch
          %170 = sbr.rel (%p168) target = $region16
        $region15: #{tpu_custom_call.1} parent=11 // pred_region
          _
        $region16: #{tpu_custom_call.1} parent=11 // pred_fallthru
          _
        // Predicated region
        $region17: #{tpu_custom_call.1} parent=11 // pred_check
          %p171 = pneg %p85
        $region18: #{tpu_custom_call.1} parent=11 // pred_check_branch
          %173 = sbr.rel (%p171) target = $region20
        $region19: #{tpu_custom_call.1} parent=11 // pred_region
          _
        $region20: #{tpu_custom_call.1} parent=11 // pred_fallthru
          _
        // Predicated region
        $region21: #{tpu_custom_call.1} parent=11 // pred_check
          %p174 = pneg %p106
        $region22: #{tpu_custom_call.1} parent=11 // pred_check_branch
          %176 = sbr.rel (%p174) target = $region24
        $region23: #{tpu_custom_call.1} parent=11 // pred_region
          _
        $region24: #{tpu_custom_call.1} parent=11 // pred_fallthru
          _
        // Predicated region
        $region25: #{tpu_custom_call.1} parent=11 // pred_check
          %p177 = pneg %p127
        $region26: #{tpu_custom_call.1} parent=11 // pred_check_branch
          %179 = sbr.rel (%p177) target = $region28
        $region27: #{tpu_custom_call.1} parent=11 // pred_region
          _
        $region28: #{tpu_custom_call.1} parent=11 // pred_fallthru
          _
      $region12: #{tpu_custom_call.1} parent=5 // pred_fallthru
        _
      %p180 = scmp.lt.s32.totalorder %s17, 2
      // Predicated region
      $region29: #{tpu_custom_call.1} parent=5 // pred_check
        %p181 = pneg %p180
      $region30: #{tpu_custom_call.1} parent=5 // pred_check_branch
        %183 = sbr.rel (%p181) target = $region32
      $region31: #{tpu_custom_call.1} parent=5 // pred_region
        // Predicated region
        $region33: #{tpu_custom_call.1} parent=31 // pred_check
          %p184 = pneg %p37
        $region34: #{tpu_custom_call.1} parent=31 // pred_check_branch
          %186 = sbr.rel (%p184) target = $region36
        $region35: #{tpu_custom_call.1} parent=31 // pred_region
          %s187 = sand.u32 %s27, 1
          %s188 = scalar_lea.sflag [#allocation3], %s187
          %s189 = sand.u32 %s27, 1
          %s190 = smul.addr %s189, 16
          %s191 = scalar_lea.vmem [#allocation2], %s190
          %s193 = ssub.s32 256, 256
          %194 = vsyncadd %s188, %s193
          %s195 = smul.addr %s17, 2
          %s196 = smul.addr %s195, 128
          %s197 = scalar_lea.hbm %s0, %s196
          %s199 = sshll.u32 %s191, 4
          %s200 = int_to_ptr.vmem [resolvable:$true] %s199
          %202 = dma.hbm_to_vmem [thread:$0]  %s197, 256, %s200, %s188
        $region36: #{tpu_custom_call.1} parent=31 // pred_fallthru
          _
      $region32: #{tpu_custom_call.1} parent=5 // pred_fallthru
        _
      %p203 = scmp.le.s32.totalorder 1, %s17
      %p204 = scmp.lt.s32.totalorder %s17, 3
      %p205 = pnand %p203, %p204
      %p206 = pneg %p205
      // Predicated region
      $region37: #{tpu_custom_call.1} parent=5 // pred_check
        _
      $region38: #{tpu_custom_call.1} parent=5 // pred_check_branch
        %208 = sbr.rel (%p205) target = $region40
      $region39: #{tpu_custom_call.1} parent=5 // pred_region
        %s209 = ssub.s32 %s17, 1
        %s210 = sand.u32 %s30, 1
        %s211 = scalar_lea.sflag [#allocation3], %s210
        %s212 = sand.u32 %s30, 1
        %s213 = smul.addr %s212, 16
        %s214 = scalar_lea.vmem [#allocation2], %s213
        // Predicated region
        $region41: #{tpu_custom_call.1} parent=39 // pred_check
          %p215 = pneg %p43
        $region42: #{tpu_custom_call.1} parent=39 // pred_check_branch
          %217 = sbr.rel (%p215) target = $region44
        $region43: #{tpu_custom_call.1} parent=39 // pred_region
          %218 = dma.done %s211, 256
        $region44: #{tpu_custom_call.1} parent=39 // pred_fallthru
          _
        %s219 = sand.u32 %s30, 1
        %s220 = scalar_lea.sflag [#allocation3], %s219
        %s221 = sand.u32 %s30, 1
        %s222 = smul.addr %s221, 16
        %s223 = scalar_lea.vmem [#allocation2], %s222
        %p224 = pneg %p43
        %p225 = pneg %p40
        %p226 = pneg %p64
        %p227 = pneg %p61
        %p228 = pneg %p85
        %p229 = pneg %p82
        %p230 = pneg %p106
        %p231 = pneg %p103
        %p232 = pneg %p127
        %p233 = pneg %p124
        %p234 = pneg %p153
        %p235 = pneg %p150
        %s236 = sand.u32 %s140, 1
        %s237 = scalar_lea.sflag [#allocation4], %s236
        %s238 = sand.u32 %s140, 1
        %s239 = smul.addr %s238, 16
        %s240 = scalar_lea.vmem [#allocation5], %s239
        %v241 = vld [vmem:[%s214] sm:$0xff]
        %v242 = vld [vmem:[%s214 + $0x8] sm:$0xff]
        %v243 = vadd.f32 %v241, %v242
        %244 = vadd.xlane.f32.xlu0 %v243
        %v245 = vpop.xlane.xlu0 %244
        %v246 = vmul.f32 %v245, 0.00390625
        %v247 = vld [vmem:[%s1] sm:$0x3]
        %v248 = vld [vmem:[%s2] sm:$0x3]
        %vm249 = vcmask 64512
        %v251 = vsel %vm249, %v247, 0
        %253 = vmatprep.subr.mxu0 0.0
        %254 = vmatpush1.msra.mxu0 %v246
        %255 = vmatprep.subr.mxu0 0.0
        %256 = vmatpush1.msra.mxu0 0.0
        %257 = vmatprep.subr.mxu0 0.0
        %258 = vmatpush1.msra.mxu0 0.0
        %259 = vmatprep.subr.mxu0 0.0
        %260 = vmatpush1.msra.mxu0 0.0
        %261 = vmatprep.subr.mxu0 0.0
        %262 = vmatpush1.msra.mxu0 0.0
        %263 = vmatprep.subr.mxu0 0.0
        %264 = vmatpush1.msra.mxu0 0.0
        %265 = vmatprep.subr.mxu0 0.0
        %266 = vmatpush1.msra.mxu0 0.0
        %267 = vmatprep.subr.mxu0 0.0
        %268 = vmatpush1.msra.mxu0 0.0
        %269 = vmatprep.subr.mxu0 0.0
        %270 = vmatpush1.msra.mxu0 0.0
        %271 = vmatprep.subr.mxu0 0.0
        %272 = vmatpush1.msra.mxu0 0.0
        %273 = vmatprep.subr.mxu0 0.0
        %274 = vmatpush1.msra.mxu0 0.0
        %275 = vmatprep.subr.mxu0 0.0
        %276 = vmatpush1.msra.mxu0 0.0
        %277 = vmatprep.subr.mxu0 0.0
        %278 = vmatpush1.msra.mxu0 0.0
        %279 = vmatprep.subr.mxu0 0.0
        %280 = vmatpush1.msra.mxu0 0.0
        %281 = vmatprep.subr.mxu0 0.0
        %282 = vmatpush1.msra.mxu0 0.0
        %283 = vmatprep.subr.mxu0 0.0
        %284 = vmatpush1.msra.mxu0 0.0
        %285 = vmatprep.subr.mxu0 0.0
        %286 = vmatpush1.msra.mxu0 0.0
        %287 = vmatprep.subr.mxu0 0.0
        %288 = vmatpush1.msra.mxu0 0.0
        %289 = vmatprep.subr.mxu0 0.0
        %290 = vmatpush1.msra.mxu0 0.0
        %291 = vmatprep.subr.mxu0 0.0
        %292 = vmatpush1.msra.mxu0 0.0
        %293 = vmatprep.subr.mxu0 0.0
        %294 = vmatpush1.msra.mxu0 0.0
        %295 = vmatprep.subr.mxu0 0.0
        %296 = vmatpush1.msra.mxu0 0.0
        %297 = vmatprep.subr.mxu0 0.0
        %298 = vmatpush1.msra.mxu0 0.0
        %299 = vmatprep.subr.mxu0 0.0
        %300 = vmatpush1.msra.mxu0 0.0
        %301 = vmatprep.subr.mxu0 0.0
        %302 = vmatpush1.msra.mxu0 0.0
        %303 = vmatprep.subr.mxu0 0.0
        %304 = vmatpush1.msra.mxu0 0.0
        %305 = vmatprep.subr.mxu0 0.0
        %306 = vmatpush1.msra.mxu0 0.0
        %307 = vmatprep.subr.mxu0 0.0
        %308 = vmatpush1.msra.mxu0 0.0
        %309 = vmatprep.subr.mxu0 0.0
        %310 = vmatpush1.msra.mxu0 0.0
        %311 = vmatprep.subr.mxu0 0.0
        %312 = vmatpush1.msra.mxu0 0.0
        %313 = vmatprep.subr.mxu0 0.0
        %314 = vmatpush1.msra.mxu0 0.0
        %315 = vmatprep.subr.mxu0 0.0
        %316 = vmatpush1.msra.mxu0 0.0
        %317 = vmatprep.mubr.f32.mxu0 0.0
        %318 = vmatmul.mubr.f32.gmra.mrb[0].mxu0 %v251
        %v319 = vpop.f32.mrb[0].mxu0
        %v320 = vadd.f32 %v248, %v319
        %v321 = vpop.f32.mrb[0].mxu0
        %322 = vdwg.mxu0
        %v323 = vmax.f32 %v320, 0.0
        %v324 = vld [vmem:[%s3] sm:$0xff]
        %v325 = vld [vmem:[%s4] sm:$0xff]
        %vm326 = vcmask 15360
        %v328 = vsel %vm326, %v324, 0
        %vm330 = vcmask 1041408
        %v332 = vsel %vm330, %v323, 0
        %334 = vmatprep.subr.mxu0 0.0
        %335 = vmatpush1.msra.mxu0 %v332
        %336 = vmatprep.subr.mxu0 0.0
        %337 = vmatpush1.msra.mxu0 0.0
        %338 = vmatprep.subr.mxu0 0.0
        %339 = vmatpush1.msra.mxu0 0.0
        %340 = vmatprep.subr.mxu0 0.0
        %341 = vmatpush1.msra.mxu0 0.0
        %342 = vmatprep.subr.mxu0 0.0
        %343 = vmatpush1.msra.mxu0 0.0
        %344 = vmatprep.subr.mxu0 0.0
        %345 = vmatpush1.msra.mxu0 0.0
        %346 = vmatprep.subr.mxu0 0.0
        %347 = vmatpush1.msra.mxu0 0.0
        %348 = vmatprep.subr.mxu0 0.0
        %349 = vmatpush1.msra.mxu0 0.0
        %350 = vmatprep.subr.mxu0 0.0
        %351 = vmatpush1.msra.mxu0 0.0
        %352 = vmatprep.subr.mxu0 0.0
        %353 = vmatpush1.msra.mxu0 0.0
        %354 = vmatprep.subr.mxu0 0.0
        %355 = vmatpush1.msra.mxu0 0.0
        %356 = vmatprep.subr.mxu0 0.0
        %357 = vmatpush1.msra.mxu0 0.0
        %358 = vmatprep.subr.mxu0 0.0
        %359 = vmatpush1.msra.mxu0 0.0
        %360 = vmatprep.subr.mxu0 0.0
        %361 = vmatpush1.msra.mxu0 0.0
        %362 = vmatprep.subr.mxu0 0.0
        %363 = vmatpush1.msra.mxu0 0.0
        %364 = vmatprep.subr.mxu0 0.0
        %365 = vmatpush1.msra.mxu0 0.0
        %366 = vmatprep.subr.mxu0 0.0
        %367 = vmatpush1.msra.mxu0 0.0
        %368 = vmatprep.subr.mxu0 0.0
        %369 = vmatpush1.msra.mxu0 0.0
        %370 = vmatprep.subr.mxu0 0.0
        %371 = vmatpush1.msra.mxu0 0.0
        %372 = vmatprep.subr.mxu0 0.0
        %373 = vmatpush1.msra.mxu0 0.0
        %374 = vmatprep.subr.mxu0 0.0
        %375 = vmatpush1.msra.mxu0 0.0
        %376 = vmatprep.subr.mxu0 0.0
        %377 = vmatpush1.msra.mxu0 0.0
        %378 = vmatprep.subr.mxu0 0.0
        %379 = vmatpush1.msra.mxu0 0.0
        %380 = vmatprep.subr.mxu0 0.0
        %381 = vmatpush1.msra.mxu0 0.0
        %382 = vmatprep.subr.mxu0 0.0
        %383 = vmatpush1.msra.mxu0 0.0
        %384 = vmatprep.subr.mxu0 0.0
        %385 = vmatpush1.msra.mxu0 0.0
        %386 = vmatprep.subr.mxu0 0.0
        %387 = vmatpush1.msra.mxu0 0.0
        %388 = vmatprep.subr.mxu0 0.0
        %389 = vmatpush1.msra.mxu0 0.0
        %390 = vmatprep.subr.mxu0 0.0
        %391 = vmatpush1.msra.mxu0 0.0
        %392 = vmatprep.subr.mxu0 0.0
        %393 = vmatpush1.msra.mxu0 0.0
        %394 = vmatprep.subr.mxu0 0.0
        %395 = vmatpush1.msra.mxu0 0.0
        %396 = vmatprep.subr.mxu0 0.0
        %397 = vmatpush1.msra.mxu0 0.0
        %398 = vmatprep.mubr.f32.mxu0 0.0
        %399 = vmatmul.mubr.f32.gmra.mrb[0].mxu0 %v328
        %v400 = vpop.f32.mrb[0].mxu0
        %v401 = vadd.f32 %v325, %v400
        %v402 = vpop.f32.mrb[0].mxu0
        %403 = vdwg.mxu0
        %v404 = vxor.u32 %v401, 2147483648
        %v405 = vmul.f32 %v404, 1.442695
        %v406 = vpow.pop %v405
        %v407 = vadd.f32 %v406, 1.0
        %v408 = vrcp.pop %v407
        %v409 = vmul.f32 1.0, %v408
        %411 = vset.pattern.permute.xlu0 0
        %412 = vperm.xlu0 %411, %v409
        %v413 = vpop.permute.xlu0 %412
        %v415 = vmul.f32 %v241, %v413
        %v416 = vmul.f32 %v242, %v413
        %417 = vst [vmem:[%s240] sm:$0xff] %v415
        %418 = vst [vmem:[%s240 + $0x8] sm:$0xff] %v416
        %s419 = sand.u32 %s140, 1
        %s420 = scalar_lea.sflag [#allocation4], %s419
        %s421 = sand.u32 %s140, 1
        %s422 = smul.addr %s421, 16
        %s423 = scalar_lea.vmem [#allocation5], %s422
        // Predicated region
        $region45: #{tpu_custom_call.1} parent=39 // pred_check
          %p424 = pneg %p150
        $region46: #{tpu_custom_call.1} parent=39 // pred_check_branch
          %426 = sbr.rel (%p424) target = $region48
        $region47: #{tpu_custom_call.1} parent=39 // pred_region
          %s428 = ssub.s32 256, 256
          %429 = vsyncadd %s420, %s428
          %s430 = smul.addr %s22, 2
          %s431 = smul.addr %s430, 128
          %s432 = scalar_lea.hbm %s5, %s431
          %s434 = sshll.u32 %s423, 4
          %s435 = int_to_ptr.vmem [resolvable:$true] %s434
          %437 = dma.vmem_to_hbm [thread:$0]  %s435, 256, %s432, %s420
        $region48: #{tpu_custom_call.1} parent=39 // pred_fallthru
          _
      $region40: #{tpu_custom_call.1} parent=5 // pred_fallthru
        _
      %p438 = scmp.le.s32.totalorder 2, %s17
      // Predicated region
      $region49: #{tpu_custom_call.1} parent=5 // pred_check
        %p439 = pneg %p438
      $region50: #{tpu_custom_call.1} parent=5 // pred_check_branch
        %441 = sbr.rel (%p439) target = $region52
      $region51: #{tpu_custom_call.1} parent=5 // pred_region
        %s442 = ssub.s32 %s17, 2
        // Predicated region
        $region53: #{tpu_custom_call.1} parent=51 // pred_check
          %p443 = pneg %p156
        $region54: #{tpu_custom_call.1} parent=51 // pred_check_branch
          %445 = sbr.rel (%p443) target = $region56
        $region55: #{tpu_custom_call.1} parent=51 // pred_region
          %s446 = sand.u32 %s141, 1
          %s447 = scalar_lea.sflag [#allocation4], %s446
          %s448 = sand.u32 %s141, 1
          %s449 = smul.addr %s448, 16
          %s450 = scalar_lea.vmem [#allocation5], %s449
          %451 = dma.done %s447, 256
        $region56: #{tpu_custom_call.1} parent=51 // pred_fallthru
          _
      $region52: #{tpu_custom_call.1} parent=5 // pred_fallthru
        _
    $region6: #{tpu_custom_call.1} parent=1 // loop_footer
      %s21 = sadd.s32 1, %s17
    $region7: #{tpu_custom_call.1} parent=1 // loop_footer_branch
      %16 = sbr.rel target = $region3
    $region8: #{tpu_custom_call.1} parent=1 // loop_exit
      _
    %452 = vsyncpa [#allocation3], 1
    %s453 = scalar_lea.sflag [#allocation3], 1
    %454 = vsyncpa %s453, 1
    %455 = vsyncpa [#allocation4], 1
    %s456 = scalar_lea.sflag [#allocation4], 1
    %457 = vsyncpa %s456, 1

</llo_original>
